<compile_context>
chip_gen: v5e
topology: v5e:2x2
jax: 0.10.0
libtpu: 0.0.40
codegen_flags: <defaults>
</compile_context>

<pallas_src>
import jax
import jax.numpy as jnp
import numpy as np
from jax.experimental import pallas as pl
from jax.experimental.pallas import tpu as pltpu


# ---------------------------------------------------------------------------
# Fused kernel:  out = conv2_1x1( BN(conv1(x)) ) + BN(conv1(x))
#   p_ref     : (bm, Kp)  bf16   im2col patches of x (rows = flattened N,Ho,Wo)
#   w1_ref    : (Kp, C)   bf16   conv1 weights with BN scale folded in
#   shift_ref : (1, C)    f32    BN shift  (beta - running_mean * scale)
#   w2_ref    : (C, C)    bf16   conv2 1x1 weights (cin, cout)
#   o_ref     : (bm, C)   f32
# ---------------------------------------------------------------------------
def _fused_kernel(p_ref, w1_ref, shift_ref, w2_ref, o_ref):
    # conv1 (+ folded BN scale) on the MXU, f32 accumulation
    y = jnp.dot(p_ref[...], w1_ref[...], preferred_element_type=jnp.float32)
    y = y + shift_ref[...]                                   # BN shift -> bn output
    # conv2 (1x1) is a plain channel matmul on the BN output
    z = jnp.dot(y.astype(jnp.bfloat16), w2_ref[...],
                preferred_element_type=jnp.float32)
    o_ref[...] = z + y                                       # residual add


# ---------------------------------------------------------------------------
# Forward pass matching test_model2.forward (eval-mode BatchNorm).
# ---------------------------------------------------------------------------
def test_model2_forward(x_nchw, w1, w2, gamma, beta, running_mean, running_var,
                        eps=0.0):
    N, Cin, H, W = x_nchw.shape
    KH, stride, pad = 7, 2, 3
    Ho = (H + 2 * pad - KH) // stride + 1
    Wo = (W + 2 * pad - KH) // stride + 1
    C = w1.shape[0]                      # 128
    M = N * Ho * Wo                      # batch folded into matmul M

    # --- im2col for conv1 (cheap XLA glue; contraction runs in the kernel) ---
    x = jnp.transpose(x_nchw, (0, 2, 3, 1))                          # NHWC
    x_pad = jnp.pad(x, ((0, 0), (pad, pad), (pad, pad), (0, 0)))
    cols = []
    for kh in range(KH):
        for kw in range(KH):
            cols.append(
                x_pad[:, kh:kh + stride * Ho:stride, kw:kw + stride * Wo:stride, :]
            )
    patches = jnp.stack(cols, axis=3)                                # (N,Ho,Wo,49,Cin)
    K = KH * KH * Cin                                                # 147
    patches = patches.reshape(M, K)
    Kp = ((K + 7) // 8) * 8                                          # 152 (sublane-aligned)
    patches = jnp.pad(patches, ((0, 0), (0, Kp - K))).astype(jnp.bfloat16)

    # --- conv1 weights (OIHW) -> (kh,kw,cin,cout), fold BN scale per cout ---
    inv_std = 1.0 / jnp.sqrt(running_var.astype(jnp.float32) + eps)
    scale = gamma.astype(jnp.float32) * inv_std                      # (C,)
    shift = beta.astype(jnp.float32) - running_mean.astype(jnp.float32) * scale
    w1r = jnp.transpose(w1, (2, 3, 1, 0)).reshape(K, C)              # (147, C)
    w1r = w1r * scale[None, :]                                       # BN scale fold
    w1r = jnp.pad(w1r, ((0, Kp - K), (0, 0))).astype(jnp.bfloat16)   # (152, C)
    shift = shift.reshape(1, C)

    # --- conv2 (1x1) weights: (O,I,1,1) -> (cin, cout) ---
    w2r = jnp.transpose(w2[:, :, 0, 0], (1, 0)).astype(jnp.bfloat16)

    # --- single fused pallas_call; split rows across 2 parallel blocks ---
    grid_m = 2 if (M % 2 == 0) else 1
    bm = M // grid_m
    out = pl.pallas_call(
        _fused_kernel,
        out_shape=jax.ShapeDtypeStruct((M, C), jnp.float32),
        grid=(grid_m,),
        in_specs=[
            pl.BlockSpec((bm, Kp), lambda i: (i, 0)),
            pl.BlockSpec((Kp, C), lambda i: (0, 0)),
            pl.BlockSpec((1, C), lambda i: (0, 0)),
            pl.BlockSpec((C, C), lambda i: (0, 0)),
        ],
        out_specs=pl.BlockSpec((bm, C), lambda i: (i, 0)),
        compiler_params=pltpu.CompilerParams(dimension_semantics=("parallel",)),
    )(patches, w1r, shift, w2r)

    out = out.reshape(N, Ho, Wo, C)
    return jnp.transpose(out, (0, 3, 1, 2))                          # back to NCHW


# ---------------------------------------------------------------------------
# Pure-JAX f32 reference (mirrors the PyTorch forward, eval-mode BN).
# ---------------------------------------------------------------------------
def _reference(x, w1, w2, gamma, beta, mean, var, eps=0.0):
    dn = ("NCHW", "OIHW", "NCHW")
    hp = jax.lax.Precision.HIGHEST
    c1 = jax.lax.conv_general_dilated(x, w1, (2, 2), [(3, 3), (3, 3)],
                                      dimension_numbers=dn, precision=hp)
    bn = ((c1 - mean[None, :, None, None]) / jnp.sqrt(var + eps)[None, :, None, None]
          * gamma[None, :, None, None] + beta[None, :, None, None])
    c2 = jax.lax.conv_general_dilated(bn, w2, (1, 1), [(0, 0), (0, 0)],
                                      dimension_numbers=dn, precision=hp)
    return c2 + bn


if __name__ == "__main__":
    key = jax.random.PRNGKey(0)
    kx, k1, k2, kg, kb, km, kv = jax.random.split(key, 7)

    # shapes consistent with the module: N=2, Cin=3, 16x16 spatial
    x = jax.random.normal(kx, (2, 3, 16, 16), dtype=jnp.float32)
    # deterministic synthetic weights (PyTorch OIHW convention, bias=False)
    w1 = 0.05 * jax.random.normal(k1, (128, 3, 7, 7), dtype=jnp.float32)
    w2 = 0.05 * jax.random.normal(k2, (128, 128, 1, 1), dtype=jnp.float32)
    # BatchNorm parameters / running stats (eps=0 -> var must stay positive)
    gamma = 1.0 + 0.1 * jax.random.normal(kg, (128,), dtype=jnp.float32)
    beta = 0.1 * jax.random.normal(kb, (128,), dtype=jnp.float32)
    running_mean = 0.1 * jax.random.normal(km, (128,), dtype=jnp.float32)
    running_var = 1.0 + jax.random.uniform(kv, (128,), dtype=jnp.float32,
                                           minval=0.1, maxval=0.5)

    out = test_model2_forward(x, w1, w2, gamma, beta, running_mean, running_var)
    out = jax.block_until_ready(out)

    ref = jax.block_until_ready(
        _reference(x, w1, w2, gamma, beta, running_mean, running_var))
    assert out.shape == ref.shape == (2, 128, 8, 8), out.shape
    # bf16 matmul operands with f32 accumulation -> slightly looser tolerance
    np.testing.assert_allclose(np.asarray(out), np.asarray(ref),
                               atol=3e-2, rtol=3e-2)

    print("KERNEL_OK")
</pallas_src>

<mosaic_0001>
module attributes {stable_mosaic.version = 11 : i64} {
  func.func @_fused_kernel(%arg0: i32, %arg1: memref<64x152xbf16, #tpu.memory_space<vmem>>, %arg2: memref<152x128xbf16, #tpu.memory_space<vmem>>, %arg3: memref<1x128xf32, #tpu.memory_space<vmem>>, %arg4: memref<128x128xbf16, #tpu.memory_space<vmem>>, %arg5: memref<64x128xf32, #tpu.memory_space<vmem>>) attributes {dimension_semantics = [#tpu.dimension_semantics<parallel>], iteration_bounds = array<i64: 2>, scalar_prefetch = 0 : i64, scratch_operands = 0 : i64, tpu.core_type = #tpu.core_type<tc>, window_params = [{transform_indices = @transform_0, window_bounds = array<i64: 64, 152>}, {pipeline_mode = #tpu.pipeline_mode<synchronous>, transform_indices = @transform_1, window_bounds = array<i64: 152, 128>}, {pipeline_mode = #tpu.pipeline_mode<synchronous>, transform_indices = @transform_2, window_bounds = array<i64: 1, 128>}, {pipeline_mode = #tpu.pipeline_mode<synchronous>, transform_indices = @transform_3, window_bounds = array<i64: 128, 128>}, {transform_indices = @transform_4, window_bounds = array<i64: 64, 128>}]} {
    %c0 = arith.constant 0 : index
    %c0_0 = arith.constant 0 : index
    %0 = vector.load %arg1[%c0, %c0_0] : memref<64x152xbf16, #tpu.memory_space<vmem>>, vector<64x152xbf16>
    %c0_1 = arith.constant 0 : index
    %c0_2 = arith.constant 0 : index
    %1 = vector.load %arg2[%c0_1, %c0_2] : memref<152x128xbf16, #tpu.memory_space<vmem>>, vector<152x128xbf16>
    %cst = arith.constant dense<0.000000e+00> : vector<64x128xf32>
    %2 = tpu.matmul %0, %1, %cst {dimension_numbers = #tpu.dot_dimension_numbers<[1], [0], [0], [1], [0, 0, 1, 1], [], []>} : vector<64x152xbf16>, vector<152x128xbf16>, vector<64x128xf32> -> vector<64x128xf32>
    %c0_3 = arith.constant 0 : index
    %c0_4 = arith.constant 0 : index
    %3 = vector.load %arg3[%c0_3, %c0_4] : memref<1x128xf32, #tpu.memory_space<vmem>>, vector<1x128xf32>
    %4 = vector.broadcast %3 : vector<1x128xf32> to vector<64x128xf32>
    %5 = arith.addf %2, %4 : vector<64x128xf32>
    %6 = arith.truncf %5 : vector<64x128xf32> to vector<64x128xbf16>
    %c0_5 = arith.constant 0 : index
    %c0_6 = arith.constant 0 : index
    %7 = vector.load %arg4[%c0_5, %c0_6] : memref<128x128xbf16, #tpu.memory_space<vmem>>, vector<128x128xbf16>
    %cst_7 = arith.constant dense<0.000000e+00> : vector<64x128xf32>
    %8 = tpu.matmul %6, %7, %cst_7 {dimension_numbers = #tpu.dot_dimension_numbers<[1], [0], [0], [1], [0, 0, 1, 1], [], []>} : vector<64x128xbf16>, vector<128x128xbf16>, vector<64x128xf32> -> vector<64x128xf32>
    %9 = arith.addf %8, %5 : vector<64x128xf32>
    %c0_8 = arith.constant 0 : index
    %c0_9 = arith.constant 0 : index
    %10 = vector.load %arg5[%c0_8, %c0_9] : memref<64x128xf32, #tpu.memory_space<vmem>>, vector<64x128xf32>
    tpu.vector_store %arg5[%c0_8, %c0_9], %9 {strides = array<i32>} : memref<64x128xf32, #tpu.memory_space<vmem>>, vector<64x128xf32>,
    return
  }
  func.func @transform_0(%arg0: i32) -> (i32, i32) {
    %c0_i32 = arith.constant 0 : i32
    %c0_i32_0 = arith.constant 0 : i32
    return %arg0, %c0_i32 : i32, i32
  }
  func.func @transform_1(%arg0: i32) -> (i32, i32) {
    %c0_i32 = arith.constant 0 : i32
    %c0_i32_0 = arith.constant 0 : i32
    %c0_i32_1 = arith.constant 0 : i32
    return %c0_i32, %c0_i32_0 : i32, i32
  }
  func.func @transform_2(%arg0: i32) -> (i32, i32) {
    %c0_i32 = arith.constant 0 : i32
    %c0_i32_0 = arith.constant 0 : i32
    %c0_i32_1 = arith.constant 0 : i32
    return %c0_i32, %c0_i32_0 : i32, i32
  }
  func.func @transform_3(%arg0: i32) -> (i32, i32) {
    %c0_i32 = arith.constant 0 : i32
    %c0_i32_0 = arith.constant 0 : i32
    %c0_i32_1 = arith.constant 0 : i32
    return %c0_i32, %c0_i32_0 : i32, i32
  }
  func.func @transform_4(%arg0: i32) -> (i32, i32) {
    %c0_i32 = arith.constant 0 : i32
    %c0_i32_0 = arith.constant 0 : i32
    return %arg0, %c0_i32 : i32, i32
  }
}

</mosaic_0001>

<llo_original>
// kernel: tpu_custom_call.1
$region0: #{tpu_custom_call.1}
  #allocation0 [shape = 'u32[]', space=smem, size = 0x4, offset = 0x4, fixed_abs, tag = 'smem constant byte address 0x4 - core index']
  #allocation1 [shape = 'u32[72,128]{1,0:T(1,128)}', space=vmem, size = 0x9000, scoped, tag = 'internal scratch']
  %s0 = inlined_call_operand.vmem [shape: bf16[128,152], index: 0, kind: input, shape index: {}]
  %s1 = inlined_call_operand.vmem [shape: bf16[152,128], index: 1, kind: input, shape index: {}]
  %s2 = inlined_call_operand.vmem [shape: f32[1,128], index: 2, kind: input, shape index: {}]
  %s3 = inlined_call_operand.vmem [shape: bf16[128,128], index: 3, kind: input, shape index: {}]
  %s4 = inlined_call_operand.hbm [shape: f32[128,128], index: 4, kind: output, shape index: {}]
  %s5 = sld [smem:[#allocation0]]
  $region49: #{tpu_custom_call.1} parent=0
    _
  %s7 = ssub.s32 1, %s5
  %s8 = scalar_select 0, %s7, %s5
  $region1: #{tpu_custom_call.1} parent=0
    #allocation2 [shape = 'u8[65536]{0}', space=vmem, size = 0x10000, scoped, tag = 'output window, operand 0']
    #allocation3 [shape = 's32[2]{0}', space=sflag, size = 0x8, scoped, tag = 'scoped memory for tpu_custom_call.1']
    %9 = vsyncpa [#allocation3], 0
    %s10 = scalar_lea.sflag [#allocation3], 1
    %11 = vsyncpa %s10, 0
    loop: start=0, step=1, limit=4
    $region2: #{tpu_custom_call.1} parent=1 // loop_pre_header
      _
    $region3: #{tpu_custom_call.1} parent=1 // loop_header
      %s13 = sphi 0, %s17
      %p14 = scmp.ge.s32.totalorder %s13, 4
      %s23 = sphi 0, %s25
      %s26 = sphi 0, %s23
      %s27 = sphi 0, %s26
      %s43 = sphi 0, %s27
      %s47 = sphi 0, %s47
      %s49 = sphi 0, %s47
      %s50 = sphi 0, %s49
      %s64 = sphi 0, %s50
      %s68 = sphi 0, %s68
      %s70 = sphi 0, %s68
      %s71 = sphi 0, %s70
      %s85 = sphi 0, %s71
      %s89 = sphi 0, %s89
      %s91 = sphi 0, %s89
      %s92 = sphi 0, %s91
      %s106 = sphi 0, %s92
      %s112 = sphi 0, %s114
      %s115 = sphi 0, %s112
      %s116 = sphi 0, %s115
      %s132 = sphi 0, %s116
    $region4: #{tpu_custom_call.1} parent=1 // loop_header_branch
      %16 = sbr.rel (%p14) target = $region8
    $region5: #{tpu_custom_call.1} parent=1 // loop_body
      %s18 = ssub.s32 %s13, 1
      %s19 = ssub.s32 %s13, 2
      %s20 = sadd.s32 %s13, 1
      %s21 = ssub.s32 %s13, %s20
      %p22 = scmp.eq.s32.totalorder %s21, 0
      %s24 = sadd.s32 %s23, 1
      %s25 = scalar_select %p22, %s23, %s24
      %p28 = pneg %p22
      %p29 = scmp.eq.s32.totalorder %s13, 1
      %p30 = por %p28, %p29
      %p31 = scmp.ne.s32.totalorder %s23, %s26
      %p32 = scmp.eq.s32.totalorder %s13, 0
      %p33 = por %p31, %p32
      %p34 = scmp.ne.s32.totalorder %s23, %s26
      %p35 = scmp.eq.s32.totalorder %s18, 1
      %p36 = por %p34, %p35
      %p37 = scmp.ne.s32.totalorder %s26, %s27
      %p38 = scmp.eq.s32.totalorder %s18, 0
      %p39 = por %p37, %p38
      %p40 = scmp.ne.s32.totalorder %s26, %s27
      %p41 = scmp.eq.s32.totalorder %s19, 1
      %p42 = por %p40, %p41
      %p44 = scmp.ne.s32.totalorder %s27, %s43
      %p45 = scmp.eq.s32.totalorder %s19, 0
      %p46 = por %p44, %p45
      %s48 = sadd.s32 %s47, 1
      %p51 = scmp.eq.s32.totalorder %s13, 1
      %p52 = scmp.ne.s32.totalorder %s47, %s49
      %p53 = scmp.eq.s32.totalorder %s13, 0
      %p54 = por %p52, %p53
      %p55 = scmp.ne.s32.totalorder %s47, %s49
      %p56 = scmp.eq.s32.totalorder %s18, 1
      %p57 = por %p55, %p56
      %p58 = scmp.ne.s32.totalorder %s49, %s50
      %p59 = scmp.eq.s32.totalorder %s18, 0
      %p60 = por %p58, %p59
      %p61 = scmp.ne.s32.totalorder %s49, %s50
      %p62 = scmp.eq.s32.totalorder %s19, 1
      %p63 = por %p61, %p62
      %p65 = scmp.ne.s32.totalorder %s50, %s64
      %p66 = scmp.eq.s32.totalorder %s19, 0
      %p67 = por %p65, %p66
      %s69 = sadd.s32 %s68, 1
      %p72 = scmp.eq.s32.totalorder %s13, 1
      %p73 = scmp.ne.s32.totalorder %s68, %s70
      %p74 = scmp.eq.s32.totalorder %s13, 0
      %p75 = por %p73, %p74
      %p76 = scmp.ne.s32.totalorder %s68, %s70
      %p77 = scmp.eq.s32.totalorder %s18, 1
      %p78 = por %p76, %p77
      %p79 = scmp.ne.s32.totalorder %s70, %s71
      %p80 = scmp.eq.s32.totalorder %s18, 0
      %p81 = por %p79, %p80
      %p82 = scmp.ne.s32.totalorder %s70, %s71
      %p83 = scmp.eq.s32.totalorder %s19, 1
      %p84 = por %p82, %p83
      %p86 = scmp.ne.s32.totalorder %s71, %s85
      %p87 = scmp.eq.s32.totalorder %s19, 0
      %p88 = por %p86, %p87
      %s90 = sadd.s32 %s89, 1
      %p93 = scmp.eq.s32.totalorder %s13, 1
      %p94 = scmp.ne.s32.totalorder %s89, %s91
      %p95 = scmp.eq.s32.totalorder %s13, 0
      %p96 = por %p94, %p95
      %p97 = scmp.ne.s32.totalorder %s89, %s91
      %p98 = scmp.eq.s32.totalorder %s18, 1
      %p99 = por %p97, %p98
      %p100 = scmp.ne.s32.totalorder %s91, %s92
      %p101 = scmp.eq.s32.totalorder %s18, 0
      %p102 = por %p100, %p101
      %p103 = scmp.ne.s32.totalorder %s91, %s92
      %p104 = scmp.eq.s32.totalorder %s19, 1
      %p105 = por %p103, %p104
      %p107 = scmp.ne.s32.totalorder %s92, %s106
      %p108 = scmp.eq.s32.totalorder %s19, 0
      %p109 = por %p107, %p108
      %s110 = ssub.s32 %s13, %s20
      %p111 = scmp.eq.s32.totalorder %s110, 0
      %s113 = sadd.s32 %s112, 1
      %s114 = scalar_select %p111, %s112, %s113
      %p117 = pneg %p111
      %p118 = scmp.eq.s32.totalorder %s13, 1
      %p119 = por %p117, %p118
      %p120 = scmp.ne.s32.totalorder %s112, %s115
      %p121 = scmp.eq.s32.totalorder %s13, 0
      %p122 = por %p120, %p121
      %p123 = scmp.ne.s32.totalorder %s112, %s115
      %p124 = scmp.eq.s32.totalorder %s18, 1
      %p125 = por %p123, %p124
      %p126 = scmp.ne.s32.totalorder %s115, %s116
      %p127 = scmp.eq.s32.totalorder %s18, 0
      %p128 = por %p126, %p127
      %p129 = scmp.ne.s32.totalorder %s115, %s116
      %p130 = scmp.eq.s32.totalorder %s19, 1
      %p131 = por %p129, %p130
      %p133 = scmp.ne.s32.totalorder %s116, %s132
      %p134 = scmp.eq.s32.totalorder %s19, 0
      %p135 = por %p133, %p134
      %p136 = scmp.le.s32.totalorder 1, %s13
      %p137 = scmp.lt.s32.totalorder %s13, 3
      %p138 = pnand %p136, %p137
      %p139 = pneg %p138
      // Predicated region
      $region9: #{tpu_custom_call.1} parent=5 // pred_check
        _
      $region10: #{tpu_custom_call.1} parent=5 // pred_check_branch
        %141 = sbr.rel (%p138) target = $region12
      $region11: #{tpu_custom_call.1} parent=5 // pred_region
        %s142 = ssub.s32 %s13, 1
        // Predicated region
        $region13: #{tpu_custom_call.1} parent=11 // pred_check
          %p143 = pneg %p60
        $region14: #{tpu_custom_call.1} parent=11 // pred_check_branch
          %145 = sbr.rel (%p143) target = $region16
        $region15: #{tpu_custom_call.1} parent=11 // pred_region
          _
        $region16: #{tpu_custom_call.1} parent=11 // pred_fallthru
          _
        // Predicated region
        $region17: #{tpu_custom_call.1} parent=11 // pred_check
          %p146 = pneg %p81
        $region18: #{tpu_custom_call.1} parent=11 // pred_check_branch
          %148 = sbr.rel (%p146) target = $region20
        $region19: #{tpu_custom_call.1} parent=11 // pred_region
          _
        $region20: #{tpu_custom_call.1} parent=11 // pred_fallthru
          _
        // Predicated region
        $region21: #{tpu_custom_call.1} parent=11 // pred_check
          %p149 = pneg %p102
        $region22: #{tpu_custom_call.1} parent=11 // pred_check_branch
          %151 = sbr.rel (%p149) target = $region24
        $region23: #{tpu_custom_call.1} parent=11 // pred_region
          _
        $region24: #{tpu_custom_call.1} parent=11 // pred_fallthru
          _
      $region12: #{tpu_custom_call.1} parent=5 // pred_fallthru
        _
      %p152 = scmp.lt.s32.totalorder %s13, 2
      // Predicated region
      $region25: #{tpu_custom_call.1} parent=5 // pred_check
        %p153 = pneg %p152
      $region26: #{tpu_custom_call.1} parent=5 // pred_check_branch
        %155 = sbr.rel (%p153) target = $region28
      $region27: #{tpu_custom_call.1} parent=5 // pred_region
        // Predicated region
        $region29: #{tpu_custom_call.1} parent=27 // pred_check
          %p156 = pneg %p33
        $region30: #{tpu_custom_call.1} parent=27 // pred_check_branch
          %158 = sbr.rel (%p156) target = $region32
        $region31: #{tpu_custom_call.1} parent=27 // pred_region
          %s159 = smul.u32 8, %s13
          %p160 = scmp.lt.s32.totalorder %s159, 15
          %s161 = scalar_select %p160, %s159, 15
          %s162 = smul.addr %s161, 2
          %s163 = smul.addr %s162, 4
          %s164 = scalar_lea.vmem %s0, %s163
          %s165 = smul.u32 8, %s13
        $region32: #{tpu_custom_call.1} parent=27 // pred_fallthru
          _
      $region28: #{tpu_custom_call.1} parent=5 // pred_fallthru
        _
      %p166 = scmp.le.s32.totalorder 1, %s13
      %p167 = scmp.lt.s32.totalorder %s13, 3
      %p168 = pnand %p166, %p167
      %p169 = pneg %p168
      // Predicated region
      $region33: #{tpu_custom_call.1} parent=5 // pred_check
        _
      $region34: #{tpu_custom_call.1} parent=5 // pred_check_branch
        %171 = sbr.rel (%p168) target = $region36
      $region35: #{tpu_custom_call.1} parent=5 // pred_region
        %s172 = ssub.s32 %s13, 1
        %s173 = smul.u32 8, %s18
        %p174 = scmp.lt.s32.totalorder %s173, 15
        %s175 = scalar_select %p174, %s173, 15
        %s176 = smul.addr %s175, 2
        %s177 = smul.addr %s176, 4
        %s178 = scalar_lea.vmem %s0, %s177
        %p179 = pneg %p39
        %p180 = pneg %p36
        %p181 = pneg %p60
        %p182 = pneg %p57
        %p183 = pneg %p81
        %p184 = pneg %p78
        %p185 = pneg %p102
        %p186 = pneg %p99
        %p187 = pneg %p128
        %p188 = pneg %p125
        %s189 = sand.u32 %s115, 1
        %s190 = scalar_lea.sflag [#allocation3], %s189
        %s191 = sand.u32 %s115, 1
        %s192 = smul.addr %s191, 64
        %s193 = scalar_lea.vmem [#allocation2], %s192
        %s194 = smul.u32 8, %s18
        %p195 = scmp.lt.s32.totalorder %s194, 15
        %s196 = scalar_select %p195, %s194, 15
        %s197 = smul.addr %s196, 2
        %s198 = smul.addr %s197, 4
        %s199 = scalar_lea.vmem %s0, %s198
        %s200 = smul.u32 8, %s18
        %s201 = smul.u32 8, %s18
        %v203 = vld [vmem:[%s199] sm:$0xff]
        %v204 = vld [vmem:[%s199 + $0x8] sm:$0xff]
        %v205 = vld [vmem:[%s199 + $0x10] sm:$0xff]
        %v206 = vld [vmem:[%s199 + $0x18] sm:$0xff]
        %v207 = vld [vmem:[%s199 + $0x20] sm:$0xff]
        %v208 = vld [vmem:[%s199 + $0x28] sm:$0xff]
        %v209 = vld [vmem:[%s199 + $0x30] sm:$0xff]
        %v210 = vld [vmem:[%s199 + $0x38] sm:$0xff]
        %v211 = vld [vmem:[%s1] sm:$0xf]
        %v212 = vld [vmem:[%s1 + $0x4] sm:$0xf]
        %v213 = vld [vmem:[%s1 + $0x8] sm:$0xf]
        %v214 = vld [vmem:[%s1 + $0xc] sm:$0xf]
        %v215 = vld [vmem:[%s1 + $0x10] sm:$0xf]
        %v216 = vld [vmem:[%s1 + $0x14] sm:$0xf]
        %v217 = vld [vmem:[%s1 + $0x18] sm:$0xf]
        %v218 = vld [vmem:[%s1 + $0x1c] sm:$0xf]
        %v219 = vld [vmem:[%s1 + $0x20] sm:$0xf]
        %v220 = vld [vmem:[%s1 + $0x24] sm:$0xf]
        %v221 = vld [vmem:[%s1 + $0x28] sm:$0xf]
        %v222 = vld [vmem:[%s1 + $0x2c] sm:$0xf]
        %v223 = vld [vmem:[%s1 + $0x30] sm:$0xf]
        %v224 = vld [vmem:[%s1 + $0x34] sm:$0xf]
        %v225 = vld [vmem:[%s1 + $0x38] sm:$0xf]
        %v226 = vld [vmem:[%s1 + $0x3c] sm:$0xf]
        %v227 = vld [vmem:[%s1 + $0x40] sm:$0xf]
        %v228 = vld [vmem:[%s1 + $0x44] sm:$0xf]
        %v229 = vld [vmem:[%s1 + $0x48] sm:$0xf]
        %v230 = vld [vmem:[%s2] sm:$0x1]
        %v232 = vperm.slane %v230, 0
        %v242 = vunpack.c.l.b16 %v203
        %v243 = vunpack.c.h.b16 %v203
        %v244 = vunpack.c.l.b16 %v204
        %v245 = vunpack.c.h.b16 %v204
        %v246 = vunpack.c.l.b16 %v205
        %v247 = vunpack.c.h.b16 %v205
        %v248 = vunpack.c.l.b16 %v206
        %v249 = vunpack.c.h.b16 %v206
        %v250 = vunpack.c.l.b16 %v207
        %v251 = vunpack.c.h.b16 %v207
        %v252 = vunpack.c.l.b16 %v208
        %v253 = vunpack.c.h.b16 %v208
        %v254 = vunpack.c.l.b16 %v209
        %v255 = vunpack.c.h.b16 %v209
        %v256 = vunpack.c.l.b16 %v210
        %v257 = vunpack.c.h.b16 %v210
        %v258 = vpack.c.b16 %v244, %v242
        %v259 = vpack.c.b16 %v245, %v243
        %v260 = vpack.c.b16 %v248, %v246
        %v261 = vpack.c.b16 %v249, %v247
        %v262 = vpack.c.b16 %v252, %v250
        %v263 = vpack.c.b16 %v253, %v251
        %v264 = vpack.c.b16 %v256, %v254
        %v265 = vpack.c.b16 %v257, %v255
        %v289 = vunpack.c.l.b16 %v211
        %v290 = vunpack.c.l.b16 %v212
        %v291 = vunpack.c.l.b16 %v213
        %v292 = vunpack.c.l.b16 %v214
        %v293 = vunpack.c.l.b16 %v215
        %v294 = vunpack.c.l.b16 %v216
        %v295 = vunpack.c.l.b16 %v217
        %v296 = vunpack.c.l.b16 %v218
        %v297 = vunpack.c.l.b16 %v219
        %v298 = vunpack.c.l.b16 %v220
        %v299 = vunpack.c.l.b16 %v221
        %v300 = vunpack.c.l.b16 %v222
        %v301 = vunpack.c.l.b16 %v223
        %v302 = vunpack.c.l.b16 %v224
        %v303 = vunpack.c.l.b16 %v225
        %v304 = vunpack.c.l.b16 %v226
        %v305 = vunpack.c.l.b16 %v227
        %v306 = vunpack.c.l.b16 %v228
        %v307 = vunpack.c.l.b16 %v229
        %v308 = vpack.c.b16 %v290, %v289
        %v309 = vpack.c.b16 %v292, %v291
        %v310 = vpack.c.b16 %v294, %v293
        %v311 = vpack.c.b16 %v296, %v295
        %v312 = vpack.c.b16 %v298, %v297
        %v313 = vpack.c.b16 %v300, %v299
        %v314 = vpack.c.b16 %v302, %v301
        %v315 = vpack.c.b16 %v304, %v303
        %v316 = vpack.c.b16 %v306, %v305
        %v317 = vpack.c.b16 %v307, %v307
        %vm327 = vcmask 195584
        %v329 = vsel %vm327, %v259, 0
        %v332 = vsel %vm327, %v261, 0
        %v335 = vsel %vm327, %v263, 0
        %v338 = vsel %vm327, %v265, 0
        %vm340 = vcmask 1043456
        %v342 = vsel %vm340, %v317, 0
        %344 = vmatpush.bf16.msra.mxu0 %v315
        %345 = vmatpush.bf16.msra.mxu0 %v314
        %346 = vmatpush.bf16.msra.mxu0 %v313
        %347 = vmatpush.bf16.msra.mxu0 %v312
        %348 = vmatpush.bf16.msra.mxu0 %v311
        %349 = vmatpush.bf16.msra.mxu0 %v310
        %350 = vmatpush.bf16.msra.mxu0 %v309
        %351 = vmatpush.bf16.msra.mxu0 %v308
        %352 = vmatmul.bf16.gmra.mxu0 %v258
        %v353 = vpop.f32.mrf.mxu0
        %v354 = vadd.f32 %v232, %v353
        %v355 = vpop.f32.mrf.mxu0
        %v356 = vadd.f32 %v232, %v355
        %357 = vmatmul.bf16.gmra.mxu0 %v260
        %v358 = vpop.f32.mrf.mxu0
        %v359 = vadd.f32 %v232, %v358
        %v360 = vpop.f32.mrf.mxu0
        %v361 = vadd.f32 %v232, %v360
        %362 = vmatmul.bf16.gmra.mxu0 %v262
        %v363 = vpop.f32.mrf.mxu0
        %v364 = vadd.f32 %v232, %v363
        %v365 = vpop.f32.mrf.mxu0
        %v366 = vadd.f32 %v232, %v365
        %367 = vmatmul.bf16.gmra.mxu0 %v264
        %v368 = vpop.f32.mrf.mxu0
        %v369 = vadd.f32 %v232, %v368
        %v370 = vpop.f32.mrf.mxu0
        %v371 = vadd.f32 %v232, %v370
        %372 = vdwg.mxu0
        %373 = vmatpush.bf16.msra.mxu0 0
        %374 = vmatpush.bf16.msra.mxu0 0
        %375 = vmatpush.bf16.msra.mxu0 0
        %376 = vmatpush.bf16.msra.mxu0 0
        %377 = vmatpush.bf16.msra.mxu0 0
        %378 = vmatpush.bf16.msra.mxu0 0
        %379 = vmatpush.bf16.msra.mxu0 %v342
        %380 = vmatpush.bf16.msra.mxu0 %v316
        %381 = vmatmul.bf16.gmra.mxu0 %v329
        %v382 = vpop.f32.mrf.mxu0
        %v383 = vadd.f32 %v354, %v382
        %v384 = vpop.f32.mrf.mxu0
        %v385 = vadd.f32 %v356, %v384
        %386 = vmatmul.bf16.gmra.mxu0 %v332
        %v387 = vpop.f32.mrf.mxu0
        %v388 = vadd.f32 %v359, %v387
        %v389 = vpop.f32.mrf.mxu0
        %v390 = vadd.f32 %v361, %v389
        %391 = vmatmul.bf16.gmra.mxu0 %v335
        %v392 = vpop.f32.mrf.mxu0
        %v393 = vadd.f32 %v364, %v392
        %v394 = vpop.f32.mrf.mxu0
        %v395 = vadd.f32 %v366, %v394
        %396 = vmatmul.bf16.gmra.mxu0 %v338
        %v397 = vpop.f32.mrf.mxu0
        %v398 = vadd.f32 %v369, %v397
        %v399 = vpop.f32.mrf.mxu0
        %v400 = vadd.f32 %v371, %v399
        %401 = vdwg.mxu0
        %v402 = vpack.c.bf16 %v385, %v383
        %v403 = vpack.c.bf16 %v390, %v388
        %v404 = vpack.c.bf16 %v395, %v393
        %v405 = vpack.c.bf16 %v400, %v398
        %v406 = vld [vmem:[%s3] sm:$0xf]
        %v407 = vld [vmem:[%s3 + $0x4] sm:$0xf]
        %v408 = vld [vmem:[%s3 + $0x8] sm:$0xf]
        %v409 = vld [vmem:[%s3 + $0xc] sm:$0xf]
        %v410 = vld [vmem:[%s3 + $0x10] sm:$0xf]
        %v411 = vld [vmem:[%s3 + $0x14] sm:$0xf]
        %v412 = vld [vmem:[%s3 + $0x18] sm:$0xf]
        %v413 = vld [vmem:[%s3 + $0x1c] sm:$0xf]
        %v414 = vld [vmem:[%s3 + $0x20] sm:$0xf]
        %v415 = vld [vmem:[%s3 + $0x24] sm:$0xf]
        %v416 = vld [vmem:[%s3 + $0x28] sm:$0xf]
        %v417 = vld [vmem:[%s3 + $0x2c] sm:$0xf]
        %v418 = vld [vmem:[%s3 + $0x30] sm:$0xf]
        %v419 = vld [vmem:[%s3 + $0x34] sm:$0xf]
        %v420 = vld [vmem:[%s3 + $0x38] sm:$0xf]
        %v421 = vld [vmem:[%s3 + $0x3c] sm:$0xf]
        %v438 = vunpack.c.l.b16 %v406
        %v439 = vunpack.c.l.b16 %v407
        %v440 = vunpack.c.l.b16 %v408
        %v441 = vunpack.c.l.b16 %v409
        %v442 = vunpack.c.l.b16 %v410
        %v443 = vunpack.c.l.b16 %v411
        %v444 = vunpack.c.l.b16 %v412
        %v445 = vunpack.c.l.b16 %v413
        %v446 = vunpack.c.l.b16 %v414
        %v447 = vunpack.c.l.b16 %v415
        %v448 = vunpack.c.l.b16 %v416
        %v449 = vunpack.c.l.b16 %v417
        %v450 = vunpack.c.l.b16 %v418
        %v451 = vunpack.c.l.b16 %v419
        %v452 = vunpack.c.l.b16 %v420
        %v453 = vunpack.c.l.b16 %v421
        %v454 = vpack.c.b16 %v439, %v438
        %v455 = vpack.c.b16 %v441, %v440
        %v456 = vpack.c.b16 %v443, %v442
        %v457 = vpack.c.b16 %v445, %v444
        %v458 = vpack.c.b16 %v447, %v446
        %v459 = vpack.c.b16 %v449, %v448
        %v460 = vpack.c.b16 %v451, %v450
        %v461 = vpack.c.b16 %v453, %v452
        %470 = vmatpush.bf16.msra.mxu0 %v461
        %471 = vmatpush.bf16.msra.mxu0 %v460
        %472 = vmatpush.bf16.msra.mxu0 %v459
        %473 = vmatpush.bf16.msra.mxu0 %v458
        %474 = vmatpush.bf16.msra.mxu0 %v457
        %475 = vmatpush.bf16.msra.mxu0 %v456
        %476 = vmatpush.bf16.msra.mxu0 %v455
        %477 = vmatpush.bf16.msra.mxu0 %v454
        %478 = vmatmul.bf16.gmra.mxu0 %v402
        %v479 = vpop.f32.mrf.mxu0
        %v480 = vadd.f32 %v383, %v479
        %v481 = vpop.f32.mrf.mxu0
        %v482 = vadd.f32 %v385, %v481
        %483 = vmatmul.bf16.gmra.mxu0 %v403
        %v484 = vpop.f32.mrf.mxu0
        %v485 = vadd.f32 %v388, %v484
        %v486 = vpop.f32.mrf.mxu0
        %v487 = vadd.f32 %v390, %v486
        %488 = vmatmul.bf16.gmra.mxu0 %v404
        %v489 = vpop.f32.mrf.mxu0
        %v490 = vadd.f32 %v393, %v489
        %v491 = vpop.f32.mrf.mxu0
        %v492 = vadd.f32 %v395, %v491
        %493 = vmatmul.bf16.gmra.mxu0 %v405
        %v494 = vpop.f32.mrf.mxu0
        %v495 = vadd.f32 %v398, %v494
        %v496 = vpop.f32.mrf.mxu0
        %v497 = vadd.f32 %v400, %v496
        %498 = vdwg.mxu0
        %499 = vst [vmem:[%s193] sm:$0xff] %v480
        %500 = vst [vmem:[%s193 + $0x8] sm:$0xff] %v482
        %501 = vst [vmem:[%s193 + $0x10] sm:$0xff] %v485
        %502 = vst [vmem:[%s193 + $0x18] sm:$0xff] %v487
        %503 = vst [vmem:[%s193 + $0x20] sm:$0xff] %v490
        %504 = vst [vmem:[%s193 + $0x28] sm:$0xff] %v492
        %505 = vst [vmem:[%s193 + $0x30] sm:$0xff] %v495
        %506 = vst [vmem:[%s193 + $0x38] sm:$0xff] %v497
        %s507 = sand.u32 %s115, 1
        %s508 = scalar_lea.sflag [#allocation3], %s507
        %s509 = sand.u32 %s115, 1
        %s510 = smul.addr %s509, 64
        %s511 = scalar_lea.vmem [#allocation2], %s510
        // Predicated region
        $region37: #{tpu_custom_call.1} parent=35 // pred_check
          %p512 = pneg %p125
        $region38: #{tpu_custom_call.1} parent=35 // pred_check_branch
          %514 = sbr.rel (%p512) target = $region40
        $region39: #{tpu_custom_call.1} parent=35 // pred_region
          %s515 = smul.u32 8, %s18
          %517 = vsyncadd %s508, 0
          %s518 = smul.addr %s515, 8
          %s519 = scalar_lea.hbm %s4, %s518
          %s520 = sshll.u32 %s511, 4
          %s521 = int_to_ptr.vmem [resolvable:$true] %s520
          %s522 = sshll.u32 %s519, 4
          %s523 = int_to_ptr.hbm [resolvable:$true] %s522
          %528 = dma.vmem_to_hbm [thread:$0]  %s521, 1024, %s523, %s508, 128, 128, 8
        $region40: #{tpu_custom_call.1} parent=35 // pred_fallthru
          _
      $region36: #{tpu_custom_call.1} parent=5 // pred_fallthru
        _
      %p529 = scmp.le.s32.totalorder 2, %s13
      // Predicated region
      $region41: #{tpu_custom_call.1} parent=5 // pred_check
        %p530 = pneg %p529
      $region42: #{tpu_custom_call.1} parent=5 // pred_check_branch
        %532 = sbr.rel (%p530) target = $region44
      $region43: #{tpu_custom_call.1} parent=5 // pred_region
        %s533 = ssub.s32 %s13, 2
        // Predicated region
        $region45: #{tpu_custom_call.1} parent=43 // pred_check
          %p534 = pneg %p131
        $region46: #{tpu_custom_call.1} parent=43 // pred_check_branch
          %536 = sbr.rel (%p534) target = $region48
        $region47: #{tpu_custom_call.1} parent=43 // pred_region
          %s537 = sand.u32 %s116, 1
          %s538 = scalar_lea.sflag [#allocation3], %s537
          %s539 = sand.u32 %s116, 1
          %s540 = smul.addr %s539, 64
          %s541 = scalar_lea.vmem [#allocation2], %s540
          %543 = dma.done %s538, 1024
        $region48: #{tpu_custom_call.1} parent=43 // pred_fallthru
          _
      $region44: #{tpu_custom_call.1} parent=5 // pred_fallthru
        _
    $region6: #{tpu_custom_call.1} parent=1 // loop_footer
      %s17 = sadd.s32 1, %s13
    $region7: #{tpu_custom_call.1} parent=1 // loop_footer_branch
      %12 = sbr.rel target = $region3
    $region8: #{tpu_custom_call.1} parent=1 // loop_exit
      _
    %544 = vsyncpa [#allocation3], 1
    %s545 = scalar_lea.sflag [#allocation3], 1
    %546 = vsyncpa %s545, 1

</llo_original>
